<compile_context>
chip_gen: v5e
topology: v5e:2x2
jax: 0.10.0
libtpu: 0.0.40
codegen_flags: <defaults>
</compile_context>

<pallas_src>
import math

import jax
import jax.numpy as jnp
from jax.experimental import pallas as pl
from jax.experimental.pallas import tpu as pltpu


def _pick_row_tile(batch_size: int) -> int:
    """Largest convenient row tile: 8-aligned divisor of B, capped at 256."""
    if batch_size <= 256:
        return batch_size
    for t in (256, 128, 64, 32, 16, 8):
        if batch_size % t == 0:
            return t
    return batch_size  # fallback: single tile


def _make_contrast_kernel(batch_size: int, row_tile: int, temperature: float,
                          use_bf16_matmul: bool):
    B = batch_size
    inv_temp = 1.0 / float(temperature)
    op_scale = inv_temp ** 0.5       # sqrt(1/T) folded into each operand
    eps = 1e-12                      # matches F.normalize default eps
    # After normalization + sqrt(1/T) prescale, sum(q*q) == 1/T by construction,
    # so every row's self-similarity term is the constant exp(1/T).  (Residual
    # vs. the MXU-computed diagonal is O(matmul rounding); negligible.)
    self_term = math.exp(inv_temp)
    scratch_dtype = jnp.bfloat16 if use_bf16_matmul else jnp.float32

    def _norm_scale(x):
        # x / max(||x||, eps) * sqrt(1/T) == x * sqrt(1/T) * rsqrt(max(||x||^2, eps^2))
        sq = jnp.sum(x * x, axis=1, keepdims=True)
        return x * (op_scale * jax.lax.rsqrt(jnp.maximum(sq, eps * eps)))

    def kernel(xi_ref, xj_ref, o_ref, z_ref):
        r = pl.program_id(0)

        @pl.when(r == 0)
        def _init():
            # One-time: normalize both views, prescale by sqrt(1/T), stack into
            # a single [2B, D] VMEM scratch (the columns operand of the fused
            # matmuls).  Persists across all grid steps.
            zi = _norm_scale(xi_ref[...].astype(jnp.float32))
            zj = _norm_scale(xj_ref[...].astype(jnp.float32))
            z_ref[pl.ds(0, B), :] = zi.astype(scratch_dtype)
            z_ref[pl.ds(B, B), :] = zj.astype(scratch_dtype)
            o_ref[...] = jnp.zeros_like(o_ref)

        # Row tile of this step, read straight from the normalized scratch.
        row_i = pl.multiple_of(r * row_tile, row_tile)
        row_j = pl.multiple_of(B + r * row_tile, row_tile)
        qi = z_ref[pl.ds(row_i, row_tile), :]          # [t, D]
        qj = z_ref[pl.ds(row_j, row_tile), :]          # [t, D]
        z_all = z_ref[...]                             # [2B, D]

        def rdot(a, b):   # a @ b.T with f32 accumulation on the MXU
            return jax.lax.dot_general(a, b, (((1,), (1,)), ((), ())),
                                       preferred_element_type=jnp.float32)

        # Two fused matmuls [t, D] x [D, 2B]; 1/T already folded into operands.
        e_i = jnp.exp(rdot(qi, z_all))                 # [t, 2B]
        e_j = jnp.exp(rdot(qj, z_all))                 # [t, 2B]

        # Row-sums minus the constant self term (the ~eye mask by subtraction).
        denom_i = jnp.sum(e_i, axis=1, keepdims=True) - self_term   # [t, 1]
        denom_j = jnp.sum(e_j, axis=1, keepdims=True) - self_term   # [t, 1]

        # Positive pair (already / T): sim[k, k+B] == sim[k+B, k] == <qi_k, qj_k>.
        pos = jnp.sum(qi.astype(jnp.float32) * qj.astype(jnp.float32),
                      axis=1, keepdims=True)                         # [t, 1]

        # -log(exp(pos)/denom) summed over both halves of this row tile.
        loss_terms = jnp.log(denom_i * denom_j) - 2.0 * pos          # [t, 1]
        o_ref[...] += jnp.sum(loss_terms, keepdims=True)             # [1, 1]

    return kernel


def contrast_loss(x_i, x_j, temperature=0.5, *, row_tile=None,
                  use_bf16_matmul=False):
    """Pallas TPU implementation of ContrastLoss.forward."""
    assert x_i.shape == x_j.shape and x_i.ndim == 2
    batch_size, feat = x_i.shape

    if row_tile is None:
        row_tile = _pick_row_tile(batch_size)
    assert batch_size % row_tile == 0
    align = 16 if use_bf16_matmul else 8   # sublane (packing) alignment of slices
    # TODO(synk): support batch sizes not divisible by the sublane alignment via
    # row padding plus a denominator correction for the padded zero rows.
    assert batch_size % align == 0 and row_tile % align == 0, (
        f"batch_size and row_tile must be multiples of {align}")
    n_tiles = batch_size // row_tile
    scratch_dtype = jnp.bfloat16 if use_bf16_matmul else jnp.float32

    # VMEM budget from the actual footprint (not a hard-coded 32 MiB).
    in_bytes = 2 * batch_size * feat * jnp.dtype(x_i.dtype).itemsize * 2  # 2 bufs each
    z_bytes = 2 * batch_size * feat * jnp.dtype(scratch_dtype).itemsize
    tmp_bytes = (4 * row_tile * 2 * batch_size * 4        # exp blocks + matmul results
                 + 2 * batch_size * feat * 4)             # one-time norm temporaries
    footprint = in_bytes + z_bytes + tmp_bytes
    try:
        phys_vmem = int(pltpu.get_tpu_info().vmem_capacity_bytes)
    except Exception:
        phys_vmem = 128 * 1024 * 1024
    vmem_limit = int(min(max(2 * footprint, 16 * 1024 * 1024),
                         int(phys_vmem * 0.75)))

    kernel = _make_contrast_kernel(batch_size, row_tile, temperature,
                                   use_bf16_matmul)

    out = pl.pallas_call(
        kernel,
        out_shape=jax.ShapeDtypeStruct((1, 1), jnp.float32),
        grid_spec=pltpu.PrefetchScalarGridSpec(
            num_scalar_prefetch=0,
            grid=(n_tiles,),
            in_specs=[
                # full inputs, resident in VMEM (only read at grid step 0)
                pl.BlockSpec((batch_size, feat), lambda r: (0, 0)),
                pl.BlockSpec((batch_size, feat), lambda r: (0, 0)),
            ],
            out_specs=pl.BlockSpec((1, 1), lambda r: (0, 0)),  # resident accumulator
            scratch_shapes=[pltpu.VMEM((2 * batch_size, feat), scratch_dtype)],
        ),
        compiler_params=pltpu.CompilerParams(
            dimension_semantics=("arbitrary",),   # reduction into o_ref + r==0 fill
            vmem_limit_bytes=vmem_limit,
        ),
    )(x_i, x_j)
    return out[0, 0] / (2.0 * batch_size)


def contrast_loss_ref(x_i, x_j, temperature=0.5):
    """Pure-JAX reference mirroring the PyTorch module."""
    batch_size = x_i.shape[0]

    def normalize(x):
        n = jnp.sqrt(jnp.sum(x * x, axis=1, keepdims=True))
        return x / jnp.maximum(n, 1e-12)

    z = jnp.concatenate([normalize(x_i), normalize(x_j)], axis=0)
    sim = jnp.matmul(z, z.T, precision=jax.lax.Precision.HIGHEST)
    sim_ij = jnp.diagonal(sim, offset=batch_size)
    sim_ji = jnp.diagonal(sim, offset=-batch_size)
    pos = jnp.concatenate([sim_ij, sim_ji], axis=0)
    nom = jnp.exp(pos / temperature)
    neg_mask = 1.0 - jnp.eye(2 * batch_size)
    denom = jnp.sum(neg_mask * jnp.exp(sim / temperature), axis=1)
    return jnp.sum(-jnp.log(nom / denom)) / (2 * batch_size)


if __name__ == "__main__":
    temperature = 0.5
    key = jax.random.PRNGKey(0)
    k1, k2, k3, k4 = jax.random.split(key, 4)

    # --- Test 1: small module-sized demo (B=8, D=32), single-tile grid --------
    B, D = 8, 32
    x_i = jax.random.normal(k1, (B, D), dtype=jnp.float32)
    x_j = jax.random.normal(k2, (B, D), dtype=jnp.float32)
    loss = jax.block_until_ready(contrast_loss(x_i, x_j, temperature))
    ref = contrast_loss_ref(x_i, x_j, temperature)
    assert jnp.allclose(loss, ref, atol=5e-3, rtol=1e-3), (loss, ref)

    # --- Test 2: exercise the multi-row-tile grid path ------------------------
    B2, D2 = 128, 64
    x_i2 = jax.random.normal(k3, (B2, D2), dtype=jnp.float32)
    x_j2 = jax.random.normal(k4, (B2, D2), dtype=jnp.float32)
    loss2 = jax.block_until_ready(
        contrast_loss(x_i2, x_j2, temperature, row_tile=32))
    ref2 = contrast_loss_ref(x_i2, x_j2, temperature)
    assert jnp.allclose(loss2, ref2, atol=5e-3, rtol=1e-3), (loss2, ref2)

    # --- Test 3: bf16 scratch + MXU operands (fast path), loose tolerance -----
    loss3 = jax.block_until_ready(
        contrast_loss(x_i2, x_j2, temperature, row_tile=32,
                      use_bf16_matmul=True))
    assert jnp.allclose(loss3, ref2, atol=5e-2, rtol=2e-2), (loss3, ref2)

    print("KERNEL_OK")
</pallas_src>

<mosaic_0001>
module attributes {stable_mosaic.version = 11 : i64} {
  func.func @kernel(%arg0: i32, %arg1: memref<8x32xf32, #tpu.memory_space<vmem>>, %arg2: memref<8x32xf32, #tpu.memory_space<vmem>>, %arg3: memref<1x1xf32, #tpu.memory_space<vmem>>, %arg4: memref<16x32xf32, #tpu.memory_space<vmem>>) attributes {dimension_semantics = [#tpu.dimension_semantics<arbitrary>], iteration_bounds = array<i64: 1>, scalar_prefetch = 0 : i64, scratch_operands = 1 : i64, tpu.core_type = #tpu.core_type<tc>, window_params = [{pipeline_mode = #tpu.pipeline_mode<synchronous>, transform_indices = @transform_0, window_bounds = array<i64: 8, 32>}, {pipeline_mode = #tpu.pipeline_mode<synchronous>, transform_indices = @transform_1, window_bounds = array<i64: 8, 32>}, {pipeline_mode = #tpu.pipeline_mode<synchronous>, transform_indices = @transform_2, window_bounds = array<i64: 1, 1>}]} {
    %c0_i32 = arith.constant 0 : i32
    %0 = arith.cmpi eq, %arg0, %c0_i32 : i32
    %1 = arith.extui %0 : i1 to i32
    %c0_i32_0 = arith.constant 0 : i32
    %2 = arith.cmpi ne, %1, %c0_i32_0 : i32
    scf.if %2 {
      %c0_18 = arith.constant 0 : index
      %c0_19 = arith.constant 0 : index
      %41 = vector.load %arg1[%c0_18, %c0_19] : memref<8x32xf32, #tpu.memory_space<vmem>>, vector<8x32xf32>
      %42 = arith.mulf %41, %41 : vector<8x32xf32>
      %cst_20 = arith.constant dense<0.000000e+00> : vector<8xf32>
      %43 = vector.multi_reduction <add>, %42, %cst_20 [1] : vector<8x32xf32> to vector<8xf32>
      %44 = vector.shape_cast %43 : vector<8xf32> to vector<8x1xf32>
      %cst_21 = arith.constant 1.000000e-24 : f32
      %45 = vector.broadcast %cst_21 : f32 to vector<8x1xf32>
      %46 = arith.maximumf %44, %45 : vector<8x1xf32>
      %47 = math.rsqrt %46 : vector<8x1xf32>
      %cst_22 = arith.constant 1.41421354 : f32
      %48 = vector.broadcast %cst_22 : f32 to vector<8x1xf32>
      %49 = arith.mulf %48, %47 : vector<8x1xf32>
      %50 = vector.broadcast %49 : vector<8x1xf32> to vector<8x32xf32>
      %51 = arith.mulf %41, %50 : vector<8x32xf32>
      %c0_23 = arith.constant 0 : index
      %c0_24 = arith.constant 0 : index
      %52 = vector.load %arg2[%c0_23, %c0_24] : memref<8x32xf32, #tpu.memory_space<vmem>>, vector<8x32xf32>
      %53 = arith.mulf %52, %52 : vector<8x32xf32>
      %cst_25 = arith.constant dense<0.000000e+00> : vector<8xf32>
      %54 = vector.multi_reduction <add>, %53, %cst_25 [1] : vector<8x32xf32> to vector<8xf32>
      %55 = vector.shape_cast %54 : vector<8xf32> to vector<8x1xf32>
      %cst_26 = arith.constant 1.000000e-24 : f32
      %56 = vector.broadcast %cst_26 : f32 to vector<8x1xf32>
      %57 = arith.maximumf %55, %56 : vector<8x1xf32>
      %58 = math.rsqrt %57 : vector<8x1xf32>
      %cst_27 = arith.constant 1.41421354 : f32
      %59 = vector.broadcast %cst_27 : f32 to vector<8x1xf32>
      %60 = arith.mulf %59, %58 : vector<8x1xf32>
      %61 = vector.broadcast %60 : vector<8x1xf32> to vector<8x32xf32>
      %62 = arith.mulf %52, %61 : vector<8x32xf32>
      %c0_28 = arith.constant 0 : index
      %c0_29 = arith.constant 0 : index
      %63 = vector.load %arg4[%c0_28, %c0_29] : memref<16x32xf32, #tpu.memory_space<vmem>>, vector<8x32xf32>
      tpu.vector_store %arg4[%c0_28, %c0_29], %51 {strides = array<i32>} : memref<16x32xf32, #tpu.memory_space<vmem>>, vector<8x32xf32>,
      %c8 = arith.constant 8 : index
      %c0_30 = arith.constant 0 : index
      %64 = vector.load %arg4[%c8, %c0_30] : memref<16x32xf32, #tpu.memory_space<vmem>>, vector<8x32xf32>
      tpu.vector_store %arg4[%c8, %c0_30], %62 {strides = array<i32>} : memref<16x32xf32, #tpu.memory_space<vmem>>, vector<8x32xf32>,
      %cst_31 = arith.constant 0.000000e+00 : f32
      %65 = vector.broadcast %cst_31 : f32 to vector<1x1xf32>
      %c0_32 = arith.constant 0 : index
      %c0_33 = arith.constant 0 : index
      %66 = vector.load %arg3[%c0_32, %c0_33] : memref<1x1xf32, #tpu.memory_space<vmem>>, vector<1x1xf32>
      tpu.vector_store %arg3[%c0_32, %c0_33], %65 {strides = array<i32>} : memref<1x1xf32, #tpu.memory_space<vmem>>, vector<1x1xf32>,
    } else {
    }
    %c8_i32 = arith.constant 8 : i32
    %3 = arith.muli %arg0, %c8_i32 : i32
    %4 = tpu.assume_multiple %3, 8 : i32
    %c8_i32_1 = arith.constant 8 : i32
    %5 = arith.muli %arg0, %c8_i32_1 : i32
    %c8_i32_2 = arith.constant 8 : i32
    %6 = arith.addi %c8_i32_2, %5 : i32
    %7 = tpu.assume_multiple %6, 8 : i32
    %8 = arith.index_cast %4 : i32 to index
    %c0 = arith.constant 0 : index
    %9 = vector.load %arg4[%8, %c0] : memref<16x32xf32, #tpu.memory_space<vmem>>, vector<8x32xf32>
    %10 = arith.index_cast %7 : i32 to index
    %c0_3 = arith.constant 0 : index
    %11 = vector.load %arg4[%10, %c0_3] : memref<16x32xf32, #tpu.memory_space<vmem>>, vector<8x32xf32>
    %c0_4 = arith.constant 0 : index
    %c0_5 = arith.constant 0 : index
    %12 = vector.load %arg4[%c0_4, %c0_5] : memref<16x32xf32, #tpu.memory_space<vmem>>, vector<16x32xf32>
    %cst = arith.constant dense<0.000000e+00> : vector<8x16xf32>
    %13 = tpu.matmul %9, %12, %cst {dimension_numbers = #tpu.dot_dimension_numbers<[1], [1], [0], [0], [0, 0, 1, 0], [], []>} : vector<8x32xf32>, vector<16x32xf32>, vector<8x16xf32> -> vector<8x16xf32>
    %14 = math.exp %13 : vector<8x16xf32>
    %cst_6 = arith.constant dense<0.000000e+00> : vector<8x16xf32>
    %15 = tpu.matmul %11, %12, %cst_6 {dimension_numbers = #tpu.dot_dimension_numbers<[1], [1], [0], [0], [0, 0, 1, 0], [], []>} : vector<8x32xf32>, vector<16x32xf32>, vector<8x16xf32> -> vector<8x16xf32>
    %16 = math.exp %15 : vector<8x16xf32>
    %cst_7 = arith.constant dense<0.000000e+00> : vector<8xf32>
    %17 = vector.multi_reduction <add>, %14, %cst_7 [1] : vector<8x16xf32> to vector<8xf32>
    %18 = vector.shape_cast %17 : vector<8xf32> to vector<8x1xf32>
    %cst_8 = arith.constant 7.3890562 : f32
    %19 = vector.broadcast %cst_8 : f32 to vector<8x1xf32>
    %20 = arith.subf %18, %19 : vector<8x1xf32>
    %cst_9 = arith.constant dense<0.000000e+00> : vector<8xf32>
    %21 = vector.multi_reduction <add>, %16, %cst_9 [1] : vector<8x16xf32> to vector<8xf32>
    %22 = vector.shape_cast %21 : vector<8xf32> to vector<8x1xf32>
    %cst_10 = arith.constant 7.3890562 : f32
    %23 = vector.broadcast %cst_10 : f32 to vector<8x1xf32>
    %24 = arith.subf %22, %23 : vector<8x1xf32>
    %25 = arith.mulf %9, %11 : vector<8x32xf32>
    %cst_11 = arith.constant dense<0.000000e+00> : vector<8xf32>
    %26 = vector.multi_reduction <add>, %25, %cst_11 [1] : vector<8x32xf32> to vector<8xf32>
    %27 = vector.shape_cast %26 : vector<8xf32> to vector<8x1xf32>
    %28 = arith.mulf %20, %24 : vector<8x1xf32>
    %29 = math.log %28 : vector<8x1xf32>
    %cst_12 = arith.constant 2.000000e+00 : f32
    %30 = vector.broadcast %cst_12 : f32 to vector<8x1xf32>
    %31 = arith.mulf %30, %27 : vector<8x1xf32>
    %32 = arith.subf %29, %31 : vector<8x1xf32>
    %c0_13 = arith.constant 0 : index
    %c0_14 = arith.constant 0 : index
    %33 = vector.load %arg3[%c0_13, %c0_14] : memref<1x1xf32, #tpu.memory_space<vmem>>, vector<1x1xf32>
    %34 = vector.shape_cast %32 : vector<8x1xf32> to vector<1x8x1xf32>
    %cst_15 = arith.constant dense<0.000000e+00> : vector<1xf32>
    %35 = vector.multi_reduction <add>, %34, %cst_15 [1, 2] : vector<1x8x1xf32> to vector<1xf32>
    %36 = vector.shape_cast %35 : vector<1xf32> to vector<1x1x1xf32>
    %37 = vector.extract %36[0, 0, 0] : f32 from vector<1x1x1xf32>
    %38 = vector.broadcast %37 : f32 to vector<1x1xf32>
    %39 = arith.addf %33, %38 : vector<1x1xf32>
    %c0_16 = arith.constant 0 : index
    %c0_17 = arith.constant 0 : index
    %40 = vector.load %arg3[%c0_16, %c0_17] : memref<1x1xf32, #tpu.memory_space<vmem>>, vector<1x1xf32>
    tpu.vector_store %arg3[%c0_16, %c0_17], %39 {strides = array<i32>} : memref<1x1xf32, #tpu.memory_space<vmem>>, vector<1x1xf32>,
    return
  }
  func.func @transform_0(%arg0: i32) -> (i32, i32) {
    %c0_i32 = arith.constant 0 : i32
    %c0_i32_0 = arith.constant 0 : i32
    %c0_i32_1 = arith.constant 0 : i32
    return %c0_i32, %c0_i32_0 : i32, i32
  }
  func.func @transform_1(%arg0: i32) -> (i32, i32) {
    %c0_i32 = arith.constant 0 : i32
    %c0_i32_0 = arith.constant 0 : i32
    %c0_i32_1 = arith.constant 0 : i32
    return %c0_i32, %c0_i32_0 : i32, i32
  }
  func.func @transform_2(%arg0: i32) -> (i32, i32) {
    %c0_i32 = arith.constant 0 : i32
    %c0_i32_0 = arith.constant 0 : i32
    %c0_i32_1 = arith.constant 0 : i32
    return %c0_i32, %c0_i32_0 : i32, i32
  }
}

</mosaic_0001>

<llo_original>
// kernel: tpu_custom_call.1
$region0: #{tpu_custom_call.1}
  #allocation0 [shape = 'u32[]', space=smem, size = 0x4, offset = 0x4, fixed_abs, tag = 'smem constant byte address 0x4 - core index']
  #allocation1 [shape = 'u32[72,128]{1,0:T(1,128)}', space=vmem, size = 0x9000, scoped, tag = 'internal scratch']
  #allocation2 [shape = 'f32[16,32]{1,0:T(8,128)}', space=vmem, size = 0x2000, scoped, tag = 'scratch operand']
  %s0 = inlined_call_operand.hbm [shape: f32[8,32], index: 0, kind: input, shape index: {}]
  %s1 = inlined_call_operand.hbm [shape: f32[8,32], index: 1, kind: input, shape index: {}]
  %s2 = inlined_call_operand.hbm [shape: f32[1,1], index: 2, kind: output, shape index: {}]
  %s3 = sld [smem:[#allocation0]]
  $region30: #{tpu_custom_call.1} parent=0
    _
  %s5 = ssub.s32 1, %s3
  %s6 = scalar_select 0, %s5, %s3
  $region1: #{tpu_custom_call.1} parent=0
    #allocation3 [shape = 'u8[4096]{0}', space=vmem, size = 0x1000, scoped, tag = 'input window, operand 0, single buffered']
    #allocation4 [shape = 's32[1]{0}', space=sflag, size = 0x4, scoped, tag = 'scoped memory for tpu_custom_call.1']
    #allocation5 [shape = 's32[1]{0}', space=sflag, size = 0x4, scoped, tag = 'scoped memory for tpu_custom_call.1']
    #allocation6 [shape = 'u8[4096]{0}', space=vmem, size = 0x1000, scoped, tag = 'input window, operand 1, single buffered']
    #allocation7 [shape = 's32[1]{0}', space=sflag, size = 0x4, scoped, tag = 'scoped memory for tpu_custom_call.1']
    #allocation8 [shape = 'u8[512]{0}', space=vmem, size = 0x400, scoped, tag = 'output window, operand 0, single buffered']
    %7 = vsyncpa [#allocation4], 0
    %8 = vsyncpa [#allocation7], 0
    %9 = vsyncpa [#allocation5], 0
    // Predicated region
    $region2: #{tpu_custom_call.1} parent=1 // pred_check
      _
    $region3: #{tpu_custom_call.1} parent=1 // pred_check_branch
      %11 = sbr.rel (0) target = $region5
    $region4: #{tpu_custom_call.1} parent=1 // pred_region
      %13 = vsyncadd [#allocation4], 0
      %s15 = sshll.u32 %s0, 4
      %s16 = int_to_ptr.hbm [resolvable:$true] %s15
      %s17 = sshll.u32 [#allocation3], 4
      %s18 = int_to_ptr.vmem [resolvable:$true] %s17
      %20 = dma.hbm_to_vmem [thread:$0]  %s16, 128, %s18, [#allocation4]
    $region5: #{tpu_custom_call.1} parent=1 // pred_fallthru
      _
    // Predicated region
    $region6: #{tpu_custom_call.1} parent=1 // pred_check
      _
    $region7: #{tpu_custom_call.1} parent=1 // pred_check_branch
      %22 = sbr.rel (0) target = $region9
    $region8: #{tpu_custom_call.1} parent=1 // pred_region
      %24 = vsyncadd [#allocation7], 0
      %s26 = sshll.u32 %s1, 4
      %s27 = int_to_ptr.hbm [resolvable:$true] %s26
      %s28 = sshll.u32 [#allocation6], 4
      %s29 = int_to_ptr.vmem [resolvable:$true] %s28
      %31 = dma.hbm_to_vmem [thread:$0]  %s27, 128, %s29, [#allocation7]
    $region9: #{tpu_custom_call.1} parent=1 // pred_fallthru
      _
    // Predicated region
    $region10: #{tpu_custom_call.1} parent=1 // pred_check
      _
    $region11: #{tpu_custom_call.1} parent=1 // pred_check_branch
      %33 = sbr.rel (0) target = $region13
    $region12: #{tpu_custom_call.1} parent=1 // pred_region
      %35 = dma.done [#allocation4], 128
    $region13: #{tpu_custom_call.1} parent=1 // pred_fallthru
      _
    // Predicated region
    $region14: #{tpu_custom_call.1} parent=1 // pred_check
      _
    $region15: #{tpu_custom_call.1} parent=1 // pred_check_branch
      %37 = sbr.rel (0) target = $region17
    $region16: #{tpu_custom_call.1} parent=1 // pred_region
      %39 = dma.done [#allocation7], 128
    $region17: #{tpu_custom_call.1} parent=1 // pred_fallthru
      _
    %p40 = scmp.eq.s32.totalorder 0, 0
    // Predicated region
    $region18: #{tpu_custom_call.1} parent=1 // pred_check
      %p41 = pneg %p40
    $region19: #{tpu_custom_call.1} parent=1 // pred_check_branch
      %43 = sbr.rel (%p41) target = $region21
    $region20: #{tpu_custom_call.1} parent=1 // pred_region
      %v44 = vld [vmem:[#allocation3] sm:$0xff]
      %v45 = vmul.f32 %v44, %v44
      %vm46 = vcmask 261120
      %v47 = vsel %vm46, %v45, 0.0
      %48 = vadd.xlane.f32.xlu0 %v47
      %v49 = vpop.xlane.xlu0 %48
      %v50 = vmax.f32 %v49, 1e-24
      %v51 = vrsqrt.pop %v50
      %v52 = vmul.f32 %v51, %v50
      %v53 = vmul.f32 %v52, %v51
      %v54 = vmul.f32 0.5, %v53
      %v55 = vsub.f32 1.5, %v54
      %v56 = vmul.f32 %v51, %v55
      %vm57 = vweird.f32 %v50
      %vm58 = vweird.f32 %v51
      %vm59 = vmor %vm57, %vm58
      %v60 = vsel %vm59, %v51, %v56
      %v61 = vmul.f32 %v60, 1.4142135
      %v62 = vmul.f32 %v44, %v61
      %v63 = vld [vmem:[#allocation6] sm:$0xff]
      %v64 = vmul.f32 %v63, %v63
      %v65 = vsel %vm46, %v64, 0.0
      %66 = vadd.xlane.f32.xlu0 %v65
      %v67 = vpop.xlane.xlu0 %66
      %v68 = vmax.f32 %v67, 1e-24
      %v69 = vrsqrt.pop %v68
      %v70 = vmul.f32 %v69, %v68
      %v71 = vmul.f32 %v70, %v69
      %v72 = vmul.f32 0.5, %v71
      %v73 = vsub.f32 1.5, %v72
      %v74 = vmul.f32 %v69, %v73
      %vm75 = vweird.f32 %v68
      %vm76 = vweird.f32 %v69
      %vm77 = vmor %vm75, %vm76
      %v78 = vsel %vm77, %v69, %v74
      %v79 = vmul.f32 %v78, 1.4142135
      %v80 = vmul.f32 %v63, %v79
      %81 = vst.msk [vmem:[#allocation2] sm:$0xff] %vm46, %v62
      %82 = vst.msk [vmem:[#allocation2 + $0x8] sm:$0xff] %vm46, %v80
      %vm83 = vcmask 0
      %84 = vst.msk [vmem:[#allocation8] sm:$0x1] %vm83, 0.0
    $region21: #{tpu_custom_call.1} parent=1 // pred_fallthru
      _
    %s85 = smul.u32 0, 8
    %s86 = sadd.s32 %s85, 8
    %s87 = scalar_lea.vmem [#allocation2], %s85
    %v88 = vld [vmem:[%s87] sm:$0xff]
    %s89 = scalar_lea.vmem [#allocation2], %s86
    %v90 = vld [vmem:[%s89] sm:$0xff]
    %v91 = vld [vmem:[#allocation2] sm:$0xff]
    %v92 = vld [vmem:[#allocation2 + $0x8] sm:$0xff]
    %vm93 = vcmask 261120
    %v95 = vsel %vm93, %v88, 0
    %v98 = vsel %vm93, %v91, 0
    %v101 = vsel %vm93, %v92, 0
    %103 = vmatpush.xpose.msra.mxu0 0.0
    %104 = vmatpush.xpose.msra.mxu0 0.0
    %105 = vmatpush.xpose.msra.mxu0 0.0
    %106 = vmatpush.xpose.msra.mxu0 0.0
    %107 = vmatpush.xpose.msra.mxu0 0.0
    %108 = vmatpush.xpose.msra.mxu0 0.0
    %109 = vmatpush.xpose.msra.mxu0 0.0
    %110 = vmatpush.xpose.msra.mxu0 0.0
    %111 = vmatpush.xpose.msra.mxu0 0.0
    %112 = vmatpush.xpose.msra.mxu0 0.0
    %113 = vmatpush.xpose.msra.mxu0 0.0
    %114 = vmatpush.xpose.msra.mxu0 0.0
    %115 = vmatpush.xpose.msra.mxu0 0.0
    %116 = vmatpush.xpose.msra.mxu0 0.0
    %117 = vmatpush.xpose.msra.mxu0 %v101
    %118 = vmatpush.xpose.msra.mxu0 %v98
    %119 = vmatmul.f32.gmra.mxu0 %v95
    %v120 = vpop.f32.mrf.mxu0
    %v121 = vadd.f32 0.0, %v120
    %122 = vdwg.mxu0
    %v123 = vmul.f32 %v121, 1.442695
    %v124 = vpow.pop %v123
    %v126 = vsel %vm93, %v90, 0
    %128 = vmatpush.xpose.msra.mxu0 0.0
    %129 = vmatpush.xpose.msra.mxu0 0.0
    %130 = vmatpush.xpose.msra.mxu0 0.0
    %131 = vmatpush.xpose.msra.mxu0 0.0
    %132 = vmatpush.xpose.msra.mxu0 0.0
    %133 = vmatpush.xpose.msra.mxu0 0.0
    %134 = vmatpush.xpose.msra.mxu0 0.0
    %135 = vmatpush.xpose.msra.mxu0 0.0
    %136 = vmatpush.xpose.msra.mxu0 0.0
    %137 = vmatpush.xpose.msra.mxu0 0.0
    %138 = vmatpush.xpose.msra.mxu0 0.0
    %139 = vmatpush.xpose.msra.mxu0 0.0
    %140 = vmatpush.xpose.msra.mxu0 0.0
    %141 = vmatpush.xpose.msra.mxu0 0.0
    %142 = vmatpush.xpose.msra.mxu0 %v101
    %143 = vmatpush.xpose.msra.mxu0 %v98
    %144 = vmatmul.f32.gmra.mxu0 %v126
    %v145 = vpop.f32.mrf.mxu0
    %v146 = vadd.f32 0.0, %v145
    %147 = vdwg.mxu0
    %v148 = vmul.f32 %v146, 1.442695
    %v149 = vpow.pop %v148
    %vm150 = vcmask 130048
    %v151 = vsel %vm150, %v124, 0.0
    %152 = vadd.xlane.f32.xlu0 %v151
    %v153 = vpop.xlane.xlu0 %152
    %v154 = vsub.f32 %v153, 7.389056
    %v155 = vsel %vm150, %v149, 0.0
    %156 = vadd.xlane.f32.xlu0 %v155
    %v157 = vpop.xlane.xlu0 %156
    %v158 = vsub.f32 %v157, 7.389056
    %v159 = vmul.f32 %v88, %v90
    %v160 = vsel %vm93, %v159, 0.0
    %161 = vadd.xlane.f32.xlu0 %v160
    %v162 = vpop.xlane.xlu0 %161
    %v163 = vmul.f32 %v154, %v158
    %v164 = vlog2.pop %v163
    %v165 = vmul.f32 %v164, 0.6931472
    %v166 = vmul.f32 %v162, 2.0
    %v167 = vsub.f32 %v165, %v166
    %v168 = vld [vmem:[#allocation8] sm:$0x1]
    %vm169 = vcmask 7168
    %v170 = vsel %vm169, %v167, 0.0
    %171 = vadd.xlane.f32.xlu0 %v170
    %v172 = vpop.xlane.xlu0 %171
    %v173 = vrot.slane %v172, 4
    %v174 = vadd.f32 %v172, %v173
    %v175 = vrot.slane %v174, 2
    %v176 = vadd.f32 %v174, %v175
    %v177 = vrot.slane %v176, 1
    %v178 = vadd.f32 %v176, %v177
    %s179 = vtos %v178
    %v180 = vstv %s179
    %v181 = vadd.f32 %v168, %v180
    %vm182 = vcmask 0
    %183 = vst.msk [vmem:[#allocation8] sm:$0x1] %vm182, %v181
    // Predicated region
    $region22: #{tpu_custom_call.1} parent=1 // pred_check
      _
    $region23: #{tpu_custom_call.1} parent=1 // pred_check_branch
      %185 = sbr.rel (0) target = $region25
    $region24: #{tpu_custom_call.1} parent=1 // pred_region
      %187 = vsyncadd [#allocation5], 0
      %s189 = sshll.u32 [#allocation8], 4
      %s190 = int_to_ptr.vmem [resolvable:$true] %s189
      %s191 = sshll.u32 %s2, 4
      %s192 = int_to_ptr.hbm [resolvable:$true] %s191
      %194 = dma.vmem_to_hbm [thread:$0]  %s190, 16, %s192, [#allocation5]
    $region25: #{tpu_custom_call.1} parent=1 // pred_fallthru
      _
    // Predicated region
    $region26: #{tpu_custom_call.1} parent=1 // pred_check
      _
    $region27: #{tpu_custom_call.1} parent=1 // pred_check_branch
      %196 = sbr.rel (0) target = $region29
    $region28: #{tpu_custom_call.1} parent=1 // pred_region
      %198 = dma.done [#allocation5], 16
    $region29: #{tpu_custom_call.1} parent=1 // pred_fallthru
      _
    %199 = vsyncpa [#allocation4], 1
    %200 = vsyncpa [#allocation7], 1
    %201 = vsyncpa [#allocation5], 1

</llo_original>
